<compile_context>
chip_gen: v5e
topology: v5e:2x2
jax: 0.10.0
libtpu: 0.0.40
codegen_flags: <defaults>
</compile_context>

<pallas_src>
import functools

import jax
import jax.numpy as jnp
from jax.experimental import pallas as pl
from jax.experimental.pallas import tpu as pltpu


# --------------------------------------------------------------------------
# Hardware-aware configuration helpers
# --------------------------------------------------------------------------
_VMEM_PHYS_FALLBACK = 128 * 1024 * 1024


def _vmem_limit_bytes():
    """Scoped-VMEM limit tied to the part: ~3/4 of physical, capped at 96 MiB
    (v5e/v6e: 128 MiB physical -> 96 MiB; v7x: 64 MiB/core -> 48 MiB)."""
    try:
        cap = int(getattr(pltpu.get_tpu_info(), "vmem_capacity_bytes",
                          _VMEM_PHYS_FALLBACK))
    except Exception:
        cap = _VMEM_PHYS_FALLBACK
    return min(cap * 3 // 4, 96 * 1024 * 1024)


def _softmax_dtype():
    """bf16 logits/exp on chips with a bf16 VPU/EUP path (v6e, v7x);
    f32 on v5e and older."""
    try:
        kind = jax.devices()[0].device_kind.lower()
    except Exception:
        kind = ""
    if any(v in kind for v in ("v2", "v3", "v4", "v5")):
        return jnp.float32
    return jnp.bfloat16


def _divisor_tiles(n, align, cap=512):
    """Tile candidates: multiples of `align` dividing n, descending; fall back
    to the full extent (exempt from the (8,128) rule) only if none exist."""
    start = min(cap, n) // align * align
    cands = [t for t in range(start, align - 1, -align) if n % t == 0]
    return cands or [n]


def _proj_bytes(tp, cin, hd, num_heads):
    twoh = max(2 * num_heads, 128)
    hdp = max(hd, 128)
    stream = 2 * (tp * cin * 2 + tp * hdp * 2 + tp * twoh * 4)  # h, feat, coef
    const = 2 * (cin * hdp * 2 + hd * twoh * 4)                 # W, attn matrix
    live = 2 * tp * hdp * 4                                     # f32 temporaries
    return stream + const + live


def _pick_proj_tile(n, cin, hd, num_heads, budget):
    cands = _divisor_tiles(n, 8)
    for tp in cands:
        if _proj_bytes(tp, cin, hd, num_heads) <= budget:
            return tp
    return cands[-1]          # smallest legal tile (never un-gridded full-N)


def _attn_bytes(ta, tu, hd, num_heads, soft_bytes):
    """Full pass-2 working set (double-buffered streams + scratch + live
    [ta, tu] temporaries), with lane padding of narrow blocks accounted for."""
    hdp = max(hd, 128)
    hp = max(num_heads, 128)
    stream = 2 * (ta * tu                 # adj tile, int8
                  + tu * hdp * 2          # feat tile, bf16
                  + num_heads * tu * 4    # el^T tile, f32
                  + 2 * ta * hp * 4       # er + m tiles, lane-padded f32
                  + hdp * 4)              # bias
    out = 2 * ta * hdp * 4                # output tile
    scratch = ta * hdp * 4 + ta * 128 * 4  # acc + denom scratch
    live = ta * tu * (4 * soft_bytes + 4)  # mask/e/p temps + f32 upcast of p
    return stream + out + scratch + live


def _pick_attn_tiles(n, hd, num_heads, soft_bytes, budget):
    ta_cands = _divisor_tiles(n, 8)      # destination (sublane) tile
    tu_cands = _divisor_tiles(n, 128)    # source (lane) tile
    fits = []
    for ta in ta_cands:
        for tu in tu_cands:
            if _attn_bytes(ta, tu, hd, num_heads, soft_bytes) <= budget:
                fits.append((ta, tu))
                break
    if not fits:
        # Tightest VMEM: smallest legal tiles (never the full array — that was
        # the inverted fallback bug in the previous version).
        return ta_cands[-1], tu_cands[-1]
    best_ta, best_tu = fits[0]
    # Prefer an even destination-tile count (balances the 2 TensorCores on
    # megacore parts) when it costs at most a 2x smaller tile.
    for ta, tu in fits:
        if n // ta >= 2 and (n // ta) % 2 == 0 and ta * 2 >= best_ta:
            return ta, tu
    return best_ta, best_tu


# --------------------------------------------------------------------------
# Kernels
# --------------------------------------------------------------------------
def _proj_kernel(h_ref, w_ref, ab_ref, feat_ref, coef_ref):
    """Per node-row tile: feature projection + raw attention coefficients."""
    feat = jnp.dot(h_ref[...], w_ref[...],
                   preferred_element_type=jnp.float32)            # [T, H*D] f32
    # coef[:, :H] = <attn_l_h, feat_h>, coef[:, H:] = <attn_r_h, feat_h>
    # via one matmul against a block-diagonal [H*D, 2H] matrix.
    coef_ref[...] = jnp.dot(feat, ab_ref[...],
                            preferred_element_type=jnp.float32)   # [T, 2H]
    feat_ref[...] = feat.astype(jnp.bfloat16)


def _attn_kernel(adj_ref, feat_ref, elt_ref, er_ref, m_ref, b_ref, out_ref,
                 acc_ref, l_ref, *, num_heads, out_dim, negative_slope,
                 apply_elu, soft_dtype):
    """Grid (dst tile i, src tile j): masked softmax attention, accumulated
    over source tiles.  m is the analytic per-row shift (no rowmax reduction,
    no online rescale)."""
    j = pl.program_id(1)

    @pl.when(j == 0)
    def _init():
        acc_ref[...] = jnp.zeros_like(acc_ref)
        l_ref[...] = jnp.zeros_like(l_ref)

    # Additive mask (0 on edges, -1e30 elsewhere), hoisted out of the head
    # loop; adjacency travels as int8 (4x less HBM/VMEM than f32).
    mask_bias = jnp.where(adj_ref[...] > 0, 0.0, -1e30).astype(soft_dtype)

    feat = feat_ref[...]                     # [tu, H*D] bf16 source features
    er = er_ref[...].astype(soft_dtype)      # [ta, H] destination coefficients
    m = m_ref[...].astype(soft_dtype)        # [ta, H] analytic softmax shift
    elt = elt_ref[...].astype(soft_dtype)    # [H, tu] source coefficients

    sums, outs = [], []
    for hh in range(num_heads):
        # e[v,u] = LeakyReLU(el[u] + er[v]); exp(e - m) <= 1 by construction
        # (m = LeakyReLU(er + max_u el), LeakyReLU monotone).
        e = er[:, hh:hh + 1] + elt[hh:hh + 1, :]                  # [ta, tu]
        e = jnp.maximum(e, negative_slope * e)                    # LeakyReLU
        p = jnp.exp(e - m[:, hh:hh + 1] + mask_bias)              # [ta, tu]
        # Row-sum in f32; aggregation accumulates in f32 on the MXU.
        sums.append(jnp.sum(p.astype(jnp.float32), axis=-1, keepdims=True))
        outs.append(jnp.dot(p.astype(jnp.bfloat16),
                            feat[:, hh * out_dim:(hh + 1) * out_dim],
                            preferred_element_type=jnp.float32))  # [ta, D]
    l_ref[...] += jnp.concatenate(sums, axis=-1)                  # [ta, H]
    acc_ref[...] += jnp.concatenate(outs, axis=-1)                # [ta, H*D]

    @pl.when(j == pl.num_programs(1) - 1)
    def _finalize():
        denom = l_ref[...]                                        # [ta, H]
        # Isolated destination rows (no self-loop): denom ~ 0 -> output = bias
        # (the reference is NaN/undefined there; self-loops are a documented
        # precondition).  The clamp only avoids inf in degenerate graphs.
        inv = pl.reciprocal(jnp.maximum(denom, 1e-30), approx=True)
        acc = acc_ref[...]
        bias = b_ref[...]
        res = []
        for hh in range(num_heads):
            o = (acc[:, hh * out_dim:(hh + 1) * out_dim] * inv[:, hh:hh + 1]
                 + bias[:, hh * out_dim:(hh + 1) * out_dim])
            if apply_elu:
                o = jnp.where(o > 0, o, jnp.exp(jnp.minimum(o, 0.0)) - 1.0)
            res.append(o)
        # Single lane-dense store of the whole [ta, H*D] slab.
        out_ref[...] = jnp.concatenate(res, axis=-1).astype(out_ref.dtype)


# --------------------------------------------------------------------------
# Wrappers
# --------------------------------------------------------------------------
def gat_conv(h, adj_i8, params, *, num_heads, out_dim, apply_elu,
             out_dtype=jnp.float32, negative_slope=0.2):
    """One GATConv layer. h: [N, Cin] -> [N, num_heads*out_dim] (out_dtype)."""
    n, cin = h.shape
    hd = num_heads * out_dim
    w, al, ar, b = params

    vmem_lim = _vmem_limit_bytes()
    budget = vmem_lim * 2 // 3            # headroom for estimate slack
    soft_dtype = _softmax_dtype()
    soft_bytes = jnp.dtype(soft_dtype).itemsize

    # Pre-cast streamed/constant matmul operands to bf16 once in the wrapper
    # (halves HBM/VMEM traffic, removes per-grid-step casts on constant blocks).
    h_bf = h.astype(jnp.bfloat16)
    w_bf = w.astype(jnp.bfloat16)

    # Block-diagonal [H*D, 2H] matrix so el/er become one real matmul:
    # ab[h*D+d, k] = al[h,d]*(h==k), ab[h*D+d, H+k] = ar[h,d]*(h==k).
    eye = jnp.eye(num_heads, dtype=jnp.float32)
    albd = (al[:, :, None] * eye[:, None, :]).reshape(hd, num_heads)
    arbd = (ar[:, :, None] * eye[:, None, :]).reshape(hd, num_heads)
    ab = jnp.concatenate([albd, arbd], axis=1)                    # [H*D, 2H]

    # ---- pass 1: projection + attention coefficients ----
    tp = _pick_proj_tile(n, cin, hd, num_heads, budget)
    feat, coef = pl.pallas_call(
        _proj_kernel,
        out_shape=(jax.ShapeDtypeStruct((n, hd), jnp.bfloat16),
                   jax.ShapeDtypeStruct((n, 2 * num_heads), jnp.float32)),
        grid=(n // tp,),
        in_specs=[pl.BlockSpec((tp, cin), lambda i: (i, 0)),
                  pl.BlockSpec((cin, hd), lambda i: (0, 0)),
                  pl.BlockSpec((hd, 2 * num_heads), lambda i: (0, 0))],
        out_specs=(pl.BlockSpec((tp, hd), lambda i: (i, 0)),
                   pl.BlockSpec((tp, 2 * num_heads), lambda i: (i, 0))),
        compiler_params=pltpu.CompilerParams(
            dimension_semantics=("parallel",), vmem_limit_bytes=vmem_lim),
        cost_estimate=pl.CostEstimate(
            flops=2 * n * cin * hd + 4 * n * hd * num_heads,
            transcendentals=0,
            bytes_accessed=2 * n * cin + 2 * cin * hd + 2 * n * hd
            + 8 * n * num_heads),
    )(h_bf, w_bf, ab)

    # Tiny O(N*H) glue in plain JAX: split coefficients, transpose el to [H, N]
    # so the source axis is lane-dense in pass 2, and precompute the analytic
    # per-row softmax shift m[v,h] = LeakyReLU(er[v,h] + max_u el[u,h]) — this
    # deletes the per-head [T, N] rowmax reduction from the kernel entirely.
    el = coef[:, :num_heads]
    er = coef[:, num_heads:]
    elt = el.T                                                    # [H, N]
    s = er + jnp.max(el, axis=0, keepdims=True)
    m_rows = jnp.maximum(s, negative_slope * s)                   # [N, H] f32

    # ---- pass 2: masked softmax + aggregation, tiled over (dst, src) ----
    ta, tu = _pick_attn_tiles(n, hd, num_heads, soft_bytes, budget)
    kernel = functools.partial(
        _attn_kernel, num_heads=num_heads, out_dim=out_dim,
        negative_slope=negative_slope, apply_elu=apply_elu,
        soft_dtype=soft_dtype)
    # TODO(synk): on v7x, pipeline_mode=pl.Buffered(1) on the constant-index
    # bias block would drop its double buffer; omitted for lowering portability.
    out = pl.pallas_call(
        kernel,
        out_shape=jax.ShapeDtypeStruct((n, hd), out_dtype),
        grid=(n // ta, n // tu),
        in_specs=[pl.BlockSpec((ta, tu), lambda i, j: (i, j)),          # adj
                  pl.BlockSpec((tu, hd), lambda i, j: (j, 0)),          # feat
                  pl.BlockSpec((num_heads, tu), lambda i, j: (0, j)),   # el^T
                  pl.BlockSpec((ta, num_heads), lambda i, j: (i, 0)),   # er
                  pl.BlockSpec((ta, num_heads), lambda i, j: (i, 0)),   # m
                  pl.BlockSpec((1, hd), lambda i, j: (0, 0))],          # bias
        out_specs=pl.BlockSpec((ta, hd), lambda i, j: (i, 0)),
        scratch_shapes=[pltpu.VMEM((ta, hd), jnp.float32),
                        pltpu.VMEM((ta, num_heads), jnp.float32)],
        compiler_params=pltpu.CompilerParams(
            dimension_semantics=("parallel", "arbitrary"),
            vmem_limit_bytes=vmem_lim),
        cost_estimate=pl.CostEstimate(
            flops=2 * num_heads * n * n * out_dim + 10 * num_heads * n * n,
            transcendentals=num_heads * n * n,
            bytes_accessed=n * n
            + (n // ta) * (2 * n * hd + 4 * num_heads * n)
            + 8 * n * num_heads + jnp.dtype(out_dtype).itemsize * n * hd),
    )(adj_i8, feat, elt, er, m_rows, b)
    return out


def init_gat_conv_params(key, in_dim, out_dim, num_heads):
    k1, k2, k3 = jax.random.split(key, 3)
    fan = in_dim + num_heads * out_dim
    scale = (2.0 / fan) ** 0.5
    w = scale * jax.random.normal(k1, (in_dim, num_heads * out_dim),
                                  dtype=jnp.float32)
    al = 0.1 * jax.random.normal(k2, (num_heads, out_dim), dtype=jnp.float32)
    ar = 0.1 * jax.random.normal(k3, (num_heads, out_dim), dtype=jnp.float32)
    b = jnp.zeros((1, num_heads * out_dim), dtype=jnp.float32)
    return (w, al, ar, b)


def gat_forward(h, adj_i8, layer_params, layer_cfgs):
    """Mirrors GAT.forward: per layer GATConv -> flatten(1) -> dropout (eval).
    Inter-layer activations stay bf16 (pass 1 consumes them in bf16 anyway)."""
    n_layers = len(layer_params)
    for l in range(n_layers):
        heads, dim, act = layer_cfgs[l]
        out_dtype = jnp.float32 if l == n_layers - 1 else jnp.bfloat16
        h = gat_conv(h, adj_i8, layer_params[l], num_heads=heads, out_dim=dim,
                     apply_elu=act, out_dtype=out_dtype)
        # output already has shape [N, heads*dim] == .flatten(1)
        # nn.Dropout / feat_drop / attn_drop are identity in eval mode.
    return (h, h)


# --------------------------------------------------------------------------
# Pure-JAX reference (for a numerical sanity check of the kernels)
# --------------------------------------------------------------------------
def gat_conv_ref(h, adj, params, *, num_heads, out_dim, apply_elu,
                 negative_slope=0.2):
    w, al, ar, b = params
    n = h.shape[0]
    feat = (h @ w).reshape(n, num_heads, out_dim)
    el = jnp.einsum('nhd,hd->nh', feat, al)     # source coefficients
    er = jnp.einsum('nhd,hd->nh', feat, ar)     # destination coefficients
    e = er[:, None, :] + el[None, :, :]         # [v, u, h]
    e = jnp.where(e >= 0, e, negative_slope * e)
    e = jnp.where(adj[:, :, None] > 0, e, -jnp.inf)
    alpha = jax.nn.softmax(e, axis=1)           # over sources u
    out = jnp.einsum('vuh,uhd->vhd', alpha, feat)
    out = out + b.reshape(1, num_heads, out_dim)
    if apply_elu:
        out = jnp.where(out > 0, out, jnp.exp(jnp.minimum(out, 0.0)) - 1.0)
    return out.reshape(n, num_heads * out_dim)


def gat_forward_ref(h, adj, layer_params, layer_cfgs):
    for l in range(len(layer_params)):
        heads, dim, act = layer_cfgs[l]
        h = gat_conv_ref(h, adj, layer_params[l],
                         num_heads=heads, out_dim=dim, apply_elu=act)
    return (h, h)


# --------------------------------------------------------------------------
# Demo
# --------------------------------------------------------------------------
if __name__ == "__main__":
    # Small, module-consistent shapes.  N=640 exercises a 2-wide destination
    # grid AND a 5-step source-accumulation axis per layer.
    N = 640           # number of graph nodes
    in_dim = 32
    n_hidden = 16
    n_heads = 4
    n_classes = 8
    n_layers = 2

    key = jax.random.PRNGKey(0)
    k_h, k_adj, k_p = jax.random.split(key, 3)

    h = jax.random.normal(k_h, (N, in_dim), dtype=jnp.float32)
    adj_f = (jax.random.uniform(k_adj, (N, N)) < 0.2).astype(jnp.float32)
    adj_f = jnp.maximum(adj_f, jnp.eye(N, dtype=jnp.float32))  # self-loops
    adj_i8 = adj_f.astype(jnp.int8)                            # int8 mask

    pkeys = jax.random.split(k_p, n_layers)
    layer_params = []
    layer_cfgs = []
    for i in range(n_layers - 1):
        in_c = in_dim if i == 0 else n_hidden * n_heads
        layer_params.append(init_gat_conv_params(pkeys[i], in_c, n_hidden,
                                                 n_heads))
        layer_cfgs.append((n_heads, n_hidden, True))           # ELU activation
    layer_params.append(init_gat_conv_params(pkeys[-1], n_hidden * n_heads,
                                             n_classes, 1))
    layer_cfgs.append((1, n_classes, False))                   # no activation

    out_a, out_b = gat_forward(h, adj_i8, layer_params, layer_cfgs)
    jax.block_until_ready(out_a)

    ref_a, _ = gat_forward_ref(h, adj_f, layer_params, layer_cfgs)

    assert out_a.shape == (N, n_classes), out_a.shape
    assert out_b.shape == (N, n_classes), out_b.shape
    assert bool(jnp.all(jnp.isfinite(out_a)))
    rel_err = jnp.linalg.norm(out_a - ref_a) / (jnp.linalg.norm(ref_a) + 1e-12)
    assert float(rel_err) < 0.05, float(rel_err)   # bf16 MXU/softmax tolerance
    print("KERNEL_OK")
</pallas_src>

<mosaic_0001>
module attributes {stable_mosaic.version = 11 : i64} {
  func.func @_proj_kernel(%arg0: i32, %arg1: memref<320x32xbf16, #tpu.memory_space<vmem>>, %arg2: memref<32x64xbf16, #tpu.memory_space<vmem>>, %arg3: memref<64x8xf32, #tpu.memory_space<vmem>>, %arg4: memref<320x64xbf16, #tpu.memory_space<vmem>>, %arg5: memref<320x8xf32, #tpu.memory_space<vmem>>) attributes {dimension_semantics = [#tpu.dimension_semantics<parallel>], iteration_bounds = array<i64: 2>, scalar_prefetch = 0 : i64, scratch_operands = 0 : i64, tpu.core_type = #tpu.core_type<tc>, window_params = [{transform_indices = @transform_0, window_bounds = array<i64: 320, 32>}, {pipeline_mode = #tpu.pipeline_mode<synchronous>, transform_indices = @transform_1, window_bounds = array<i64: 32, 64>}, {pipeline_mode = #tpu.pipeline_mode<synchronous>, transform_indices = @transform_2, window_bounds = array<i64: 64, 8>}, {transform_indices = @transform_3, window_bounds = array<i64: 320, 64>}, {transform_indices = @transform_4, window_bounds = array<i64: 320, 8>}]} {
    %c0 = arith.constant 0 : index
    %c0_0 = arith.constant 0 : index
    %0 = vector.load %arg1[%c0, %c0_0] : memref<320x32xbf16, #tpu.memory_space<vmem>>, vector<320x32xbf16>
    %c0_1 = arith.constant 0 : index
    %c0_2 = arith.constant 0 : index
    %1 = vector.load %arg2[%c0_1, %c0_2] : memref<32x64xbf16, #tpu.memory_space<vmem>>, vector<32x64xbf16>
    %cst = arith.constant dense<0.000000e+00> : vector<320x64xf32>
    %2 = tpu.matmul %0, %1, %cst {dimension_numbers = #tpu.dot_dimension_numbers<[1], [0], [0], [1], [0, 0, 1, 1], [], []>} : vector<320x32xbf16>, vector<32x64xbf16>, vector<320x64xf32> -> vector<320x64xf32>
    %c0_3 = arith.constant 0 : index
    %c0_4 = arith.constant 0 : index
    %3 = vector.load %arg3[%c0_3, %c0_4] : memref<64x8xf32, #tpu.memory_space<vmem>>, vector<64x8xf32>
    %cst_5 = arith.constant dense<0.000000e+00> : vector<320x8xf32>
    %4 = tpu.matmul %2, %3, %cst_5 {dimension_numbers = #tpu.dot_dimension_numbers<[1], [0], [0], [1], [0, 0, 1, 1], [], []>} : vector<320x64xf32>, vector<64x8xf32>, vector<320x8xf32> -> vector<320x8xf32>
    %c0_6 = arith.constant 0 : index
    %c0_7 = arith.constant 0 : index
    %5 = vector.load %arg5[%c0_6, %c0_7] : memref<320x8xf32, #tpu.memory_space<vmem>>, vector<320x8xf32>
    tpu.vector_store %arg5[%c0_6, %c0_7], %4 {strides = array<i32>} : memref<320x8xf32, #tpu.memory_space<vmem>>, vector<320x8xf32>,
    %6 = arith.truncf %2 : vector<320x64xf32> to vector<320x64xbf16>
    %c0_8 = arith.constant 0 : index
    %c0_9 = arith.constant 0 : index
    %7 = vector.load %arg4[%c0_8, %c0_9] : memref<320x64xbf16, #tpu.memory_space<vmem>>, vector<320x64xbf16>
    tpu.vector_store %arg4[%c0_8, %c0_9], %6 {strides = array<i32>} : memref<320x64xbf16, #tpu.memory_space<vmem>>, vector<320x64xbf16>,
    return
  }
  func.func @transform_0(%arg0: i32) -> (i32, i32) {
    %c0_i32 = arith.constant 0 : i32
    %c0_i32_0 = arith.constant 0 : i32
    return %arg0, %c0_i32 : i32, i32
  }
  func.func @transform_1(%arg0: i32) -> (i32, i32) {
    %c0_i32 = arith.constant 0 : i32
    %c0_i32_0 = arith.constant 0 : i32
    %c0_i32_1 = arith.constant 0 : i32
    return %c0_i32, %c0_i32_0 : i32, i32
  }
  func.func @transform_2(%arg0: i32) -> (i32, i32) {
    %c0_i32 = arith.constant 0 : i32
    %c0_i32_0 = arith.constant 0 : i32
    %c0_i32_1 = arith.constant 0 : i32
    return %c0_i32, %c0_i32_0 : i32, i32
  }
  func.func @transform_3(%arg0: i32) -> (i32, i32) {
    %c0_i32 = arith.constant 0 : i32
    %c0_i32_0 = arith.constant 0 : i32
    return %arg0, %c0_i32 : i32, i32
  }
  func.func @transform_4(%arg0: i32) -> (i32, i32) {
    %c0_i32 = arith.constant 0 : i32
    %c0_i32_0 = arith.constant 0 : i32
    return %arg0, %c0_i32 : i32, i32
  }
}

</mosaic_0001>

<llo_original>
// kernel: tpu_custom_call.1
$region0: #{tpu_custom_call.1}
  #allocation0 [shape = 'u32[]', space=smem, size = 0x4, offset = 0x4, fixed_abs, tag = 'smem constant byte address 0x4 - core index']
  #allocation1 [shape = 'u32[72,128]{1,0:T(1,128)}', space=vmem, size = 0x9000, scoped, tag = 'internal scratch']
  %s0 = inlined_call_operand.vmem [shape: bf16[640,32], index: 0, kind: input, shape index: {}]
  %s1 = inlined_call_operand.vmem [shape: bf16[32,64], index: 1, kind: input, shape index: {}]
  %s2 = inlined_call_operand.vmem [shape: f32[64,8], index: 2, kind: input, shape index: {}]
  %s3 = inlined_call_operand.vmem [shape: bf16[640,64], index: 3, kind: output, shape index: {0}]
  %s4 = inlined_call_operand.vmem [shape: f32[640,8], index: 4, kind: output, shape index: {1}]
  %5 = xla_tuple %s3, %s4
  %s6 = sld [smem:[#allocation0]]
  $region53: #{tpu_custom_call.1} parent=0
    _
  %s8 = ssub.s32 1, %s6
  %s9 = scalar_select 0, %s8, %s6
  loop: start=0, step=1, limit=4
  $region2: #{tpu_custom_call.1} parent=0 // loop_pre_header
    _
  $region3: #{tpu_custom_call.1} parent=0 // loop_header
    %s11 = sphi 0, %s15
    %p12 = scmp.ge.s32.totalorder %s11, 4
    %s21 = sphi 0, %s23
    %s24 = sphi 0, %s21
    %s25 = sphi 0, %s24
    %s41 = sphi 0, %s25
    %s45 = sphi 0, %s45
    %s47 = sphi 0, %s45
    %s48 = sphi 0, %s47
    %s62 = sphi 0, %s48
    %s66 = sphi 0, %s66
    %s68 = sphi 0, %s66
    %s69 = sphi 0, %s68
    %s83 = sphi 0, %s69
    %s89 = sphi 0, %s91
    %s92 = sphi 0, %s89
    %s93 = sphi 0, %s92
    %s109 = sphi 0, %s93
    %s115 = sphi 0, %s117
    %s118 = sphi 0, %s115
    %s119 = sphi 0, %s118
    %s135 = sphi 0, %s119
  $region4: #{tpu_custom_call.1} parent=0 // loop_header_branch
    %14 = sbr.rel (%p12) target = $region8
  $region5: #{tpu_custom_call.1} parent=0 // loop_body
    %s16 = ssub.s32 %s11, 1
    %s17 = ssub.s32 %s11, 2
    %s18 = sadd.s32 %s11, 1
    %s19 = ssub.s32 %s11, %s18
    %p20 = scmp.eq.s32.totalorder %s19, 0
    %s22 = sadd.s32 %s21, 1
    %s23 = scalar_select %p20, %s21, %s22
    %p26 = pneg %p20
    %p27 = scmp.eq.s32.totalorder %s11, 1
    %p28 = por %p26, %p27
    %p29 = scmp.ne.s32.totalorder %s21, %s24
    %p30 = scmp.eq.s32.totalorder %s11, 0
    %p31 = por %p29, %p30
    %p32 = scmp.ne.s32.totalorder %s21, %s24
    %p33 = scmp.eq.s32.totalorder %s16, 1
    %p34 = por %p32, %p33
    %p35 = scmp.ne.s32.totalorder %s24, %s25
    %p36 = scmp.eq.s32.totalorder %s16, 0
    %p37 = por %p35, %p36
    %p38 = scmp.ne.s32.totalorder %s24, %s25
    %p39 = scmp.eq.s32.totalorder %s17, 1
    %p40 = por %p38, %p39
    %p42 = scmp.ne.s32.totalorder %s25, %s41
    %p43 = scmp.eq.s32.totalorder %s17, 0
    %p44 = por %p42, %p43
    %s46 = sadd.s32 %s45, 1
    %p49 = scmp.eq.s32.totalorder %s11, 1
    %p50 = scmp.ne.s32.totalorder %s45, %s47
    %p51 = scmp.eq.s32.totalorder %s11, 0
    %p52 = por %p50, %p51
    %p53 = scmp.ne.s32.totalorder %s45, %s47
    %p54 = scmp.eq.s32.totalorder %s16, 1
    %p55 = por %p53, %p54
    %p56 = scmp.ne.s32.totalorder %s47, %s48
    %p57 = scmp.eq.s32.totalorder %s16, 0
    %p58 = por %p56, %p57
    %p59 = scmp.ne.s32.totalorder %s47, %s48
    %p60 = scmp.eq.s32.totalorder %s17, 1
    %p61 = por %p59, %p60
    %p63 = scmp.ne.s32.totalorder %s48, %s62
    %p64 = scmp.eq.s32.totalorder %s17, 0
    %p65 = por %p63, %p64
    %s67 = sadd.s32 %s66, 1
    %p70 = scmp.eq.s32.totalorder %s11, 1
    %p71 = scmp.ne.s32.totalorder %s66, %s68
    %p72 = scmp.eq.s32.totalorder %s11, 0
    %p73 = por %p71, %p72
    %p74 = scmp.ne.s32.totalorder %s66, %s68
    %p75 = scmp.eq.s32.totalorder %s16, 1
    %p76 = por %p74, %p75
    %p77 = scmp.ne.s32.totalorder %s68, %s69
    %p78 = scmp.eq.s32.totalorder %s16, 0
    %p79 = por %p77, %p78
    %p80 = scmp.ne.s32.totalorder %s68, %s69
    %p81 = scmp.eq.s32.totalorder %s17, 1
    %p82 = por %p80, %p81
    %p84 = scmp.ne.s32.totalorder %s69, %s83
    %p85 = scmp.eq.s32.totalorder %s17, 0
    %p86 = por %p84, %p85
    %s87 = ssub.s32 %s11, %s18
    %p88 = scmp.eq.s32.totalorder %s87, 0
    %s90 = sadd.s32 %s89, 1
    %s91 = scalar_select %p88, %s89, %s90
    %p94 = pneg %p88
    %p95 = scmp.eq.s32.totalorder %s11, 1
    %p96 = por %p94, %p95
    %p97 = scmp.ne.s32.totalorder %s89, %s92
    %p98 = scmp.eq.s32.totalorder %s11, 0
    %p99 = por %p97, %p98
    %p100 = scmp.ne.s32.totalorder %s89, %s92
    %p101 = scmp.eq.s32.totalorder %s16, 1
    %p102 = por %p100, %p101
    %p103 = scmp.ne.s32.totalorder %s92, %s93
    %p104 = scmp.eq.s32.totalorder %s16, 0
    %p105 = por %p103, %p104
    %p106 = scmp.ne.s32.totalorder %s92, %s93
    %p107 = scmp.eq.s32.totalorder %s17, 1
    %p108 = por %p106, %p107
    %p110 = scmp.ne.s32.totalorder %s93, %s109
    %p111 = scmp.eq.s32.totalorder %s17, 0
    %p112 = por %p110, %p111
    %s113 = ssub.s32 %s11, %s18
    %p114 = scmp.eq.s32.totalorder %s113, 0
    %s116 = sadd.s32 %s115, 1
    %s117 = scalar_select %p114, %s115, %s116
    %p120 = pneg %p114
    %p121 = scmp.eq.s32.totalorder %s11, 1
    %p122 = por %p120, %p121
    %p123 = scmp.ne.s32.totalorder %s115, %s118
    %p124 = scmp.eq.s32.totalorder %s11, 0
    %p125 = por %p123, %p124
    %p126 = scmp.ne.s32.totalorder %s115, %s118
    %p127 = scmp.eq.s32.totalorder %s16, 1
    %p128 = por %p126, %p127
    %p129 = scmp.ne.s32.totalorder %s118, %s119
    %p130 = scmp.eq.s32.totalorder %s16, 0
    %p131 = por %p129, %p130
    %p132 = scmp.ne.s32.totalorder %s118, %s119
    %p133 = scmp.eq.s32.totalorder %s17, 1
    %p134 = por %p132, %p133
    %p136 = scmp.ne.s32.totalorder %s119, %s135
    %p137 = scmp.eq.s32.totalorder %s17, 0
    %p138 = por %p136, %p137
    %p139 = scmp.le.s32.totalorder 1, %s11
    %p140 = scmp.lt.s32.totalorder %s11, 3
    %p141 = pnand %p139, %p140
    %p142 = pneg %p141
    // Predicated region
    $region9: #{tpu_custom_call.1} parent=5 // pred_check
      _
    $region10: #{tpu_custom_call.1} parent=5 // pred_check_branch
      %144 = sbr.rel (%p141) target = $region12
    $region11: #{tpu_custom_call.1} parent=5 // pred_region
      %s145 = ssub.s32 %s11, 1
      // Predicated region
      $region13: #{tpu_custom_call.1} parent=11 // pred_check
        %p146 = pneg %p58
      $region14: #{tpu_custom_call.1} parent=11 // pred_check_branch
        %148 = sbr.rel (%p146) target = $region16
      $region15: #{tpu_custom_call.1} parent=11 // pred_region
        _
      $region16: #{tpu_custom_call.1} parent=11 // pred_fallthru
        _
      // Predicated region
      $region17: #{tpu_custom_call.1} parent=11 // pred_check
        %p149 = pneg %p79
      $region18: #{tpu_custom_call.1} parent=11 // pred_check_branch
        %151 = sbr.rel (%p149) target = $region20
      $region19: #{tpu_custom_call.1} parent=11 // pred_region
        _
      $region20: #{tpu_custom_call.1} parent=11 // pred_fallthru
        _
    $region12: #{tpu_custom_call.1} parent=5 // pred_fallthru
      _
    %p152 = scmp.lt.s32.totalorder %s11, 2
    // Predicated region
    $region21: #{tpu_custom_call.1} parent=5 // pred_check
      %p153 = pneg %p152
    $region22: #{tpu_custom_call.1} parent=5 // pred_check_branch
      %155 = sbr.rel (%p153) target = $region24
    $region23: #{tpu_custom_call.1} parent=5 // pred_region
      // Predicated region
      $region25: #{tpu_custom_call.1} parent=23 // pred_check
        %p156 = pneg %p31
      $region26: #{tpu_custom_call.1} parent=23 // pred_check_branch
        %158 = sbr.rel (%p156) target = $region28
      $region27: #{tpu_custom_call.1} parent=23 // pred_region
        %s159 = smul.u32 40, %s11
        %p160 = scmp.lt.s32.totalorder %s159, 79
        %s161 = scalar_select %p160, %s159, 79
        %s162 = smul.addr %s161, 4
        %s163 = scalar_lea.vmem %s0, %s162
        %s164 = smul.u32 40, %s11
      $region28: #{tpu_custom_call.1} parent=23 // pred_fallthru
        _
    $region24: #{tpu_custom_call.1} parent=5 // pred_fallthru
      _
    %p165 = scmp.le.s32.totalorder 1, %s11
    %p166 = scmp.lt.s32.totalorder %s11, 3
    %p167 = pnand %p165, %p166
    %p168 = pneg %p167
    // Predicated region
    $region29: #{tpu_custom_call.1} parent=5 // pred_check
      _
    $region30: #{tpu_custom_call.1} parent=5 // pred_check_branch
      %170 = sbr.rel (%p167) target = $region32
    $region31: #{tpu_custom_call.1} parent=5 // pred_region
      %s171 = ssub.s32 %s11, 1
      %s172 = smul.u32 40, %s16
      %p173 = scmp.lt.s32.totalorder %s172, 79
      %s174 = scalar_select %p173, %s172, 79
      %s175 = smul.addr %s174, 4
      %s176 = scalar_lea.vmem %s0, %s175
      %p177 = pneg %p37
      %p178 = pneg %p34
      %p179 = pneg %p58
      %p180 = pneg %p55
      %p181 = pneg %p79
      %p182 = pneg %p76
      %p183 = pneg %p105
      %p184 = pneg %p102
      %s185 = smul.u32 40, %s16
      %p186 = scmp.lt.s32.totalorder %s185, 79
      %s187 = scalar_select %p186, %s185, 79
      %s188 = smul.addr %s187, 4
      %s189 = scalar_lea.vmem %s3, %s188
      %p190 = pneg %p131
      %p191 = pneg %p128
      %s192 = smul.u32 40, %s16
      %p193 = scmp.lt.s32.totalorder %s192, 79
      %s194 = scalar_select %p193, %s192, 79
      %s195 = smul.addr %s194, 8
      %s196 = scalar_lea.vmem %s4, %s195
      %s197 = smul.u32 40, %s16
      %p198 = scmp.lt.s32.totalorder %s197, 79
      %s199 = scalar_select %p198, %s197, 79
      %s200 = smul.addr %s199, 4
      %s201 = scalar_lea.vmem %s0, %s200
      %s202 = smul.u32 40, %s16
      %s203 = smul.u32 40, %s16
      %p204 = scmp.lt.s32.totalorder %s203, 79
      %s205 = scalar_select %p204, %s203, 79
      %s206 = smul.addr %s205, 4
      %s207 = scalar_lea.vmem %s3, %s206
      %s208 = smul.u32 40, %s16
      %s209 = smul.u32 40, %s16
      %p210 = scmp.lt.s32.totalorder %s209, 79
      %s211 = scalar_select %p210, %s209, 79
      %s212 = smul.addr %s211, 8
      %s213 = scalar_lea.vmem %s4, %s212
      %s214 = smul.u32 40, %s16
      %v216 = vld [vmem:[%s201] sm:$0xf]
      %v217 = vld [vmem:[%s201 + $0x4] sm:$0xf]
      %v218 = vld [vmem:[%s201 + $0x8] sm:$0xf]
      %v219 = vld [vmem:[%s201 + $0xc] sm:$0xf]
      %v220 = vld [vmem:[%s201 + $0x10] sm:$0xf]
      %v221 = vld [vmem:[%s201 + $0x14] sm:$0xf]
      %v222 = vld [vmem:[%s201 + $0x18] sm:$0xf]
      %v223 = vld [vmem:[%s201 + $0x1c] sm:$0xf]
      %v224 = vld [vmem:[%s201 + $0x20] sm:$0xf]
      %v225 = vld [vmem:[%s201 + $0x24] sm:$0xf]
      %v226 = vld [vmem:[%s201 + $0x28] sm:$0xf]
      %v227 = vld [vmem:[%s201 + $0x2c] sm:$0xf]
      %v228 = vld [vmem:[%s201 + $0x30] sm:$0xf]
      %v229 = vld [vmem:[%s201 + $0x34] sm:$0xf]
      %v230 = vld [vmem:[%s201 + $0x38] sm:$0xf]
      %v231 = vld [vmem:[%s201 + $0x3c] sm:$0xf]
      %v232 = vld [vmem:[%s201 + $0x40] sm:$0xf]
      %v233 = vld [vmem:[%s201 + $0x44] sm:$0xf]
      %v234 = vld [vmem:[%s201 + $0x48] sm:$0xf]
      %v235 = vld [vmem:[%s201 + $0x4c] sm:$0xf]
      %v236 = vld [vmem:[%s201 + $0x50] sm:$0xf]
      %v237 = vld [vmem:[%s201 + $0x54] sm:$0xf]
      %v238 = vld [vmem:[%s201 + $0x58] sm:$0xf]
      %v239 = vld [vmem:[%s201 + $0x5c] sm:$0xf]
      %v240 = vld [vmem:[%s201 + $0x60] sm:$0xf]
      %v241 = vld [vmem:[%s201 + $0x64] sm:$0xf]
      %v242 = vld [vmem:[%s201 + $0x68] sm:$0xf]
      %v243 = vld [vmem:[%s201 + $0x6c] sm:$0xf]
      %v244 = vld [vmem:[%s201 + $0x70] sm:$0xf]
      %v245 = vld [vmem:[%s201 + $0x74] sm:$0xf]
      %v246 = vld [vmem:[%s201 + $0x78] sm:$0xf]
      %v247 = vld [vmem:[%s201 + $0x7c] sm:$0xf]
      %v248 = vld [vmem:[%s201 + $0x80] sm:$0xf]
      %v249 = vld [vmem:[%s201 + $0x84] sm:$0xf]
      %v250 = vld [vmem:[%s201 + $0x88] sm:$0xf]
      %v251 = vld [vmem:[%s201 + $0x8c] sm:$0xf]
      %v252 = vld [vmem:[%s201 + $0x90] sm:$0xf]
      %v253 = vld [vmem:[%s201 + $0x94] sm:$0xf]
      %v254 = vld [vmem:[%s201 + $0x98] sm:$0xf]
      %v255 = vld [vmem:[%s201 + $0x9c] sm:$0xf]
      %v256 = vld [vmem:[%s1] sm:$0xf]
      %v257 = vld [vmem:[%s1 + $0x4] sm:$0xf]
      %v258 = vld [vmem:[%s1 + $0x8] sm:$0xf]
      %v259 = vld [vmem:[%s1 + $0xc] sm:$0xf]
      %v300 = vunpack.c.l.b16 %v216
      %v301 = vunpack.c.l.b16 %v217
      %v302 = vunpack.c.l.b16 %v218
      %v303 = vunpack.c.l.b16 %v219
      %v304 = vunpack.c.l.b16 %v220
      %v305 = vunpack.c.l.b16 %v221
      %v306 = vunpack.c.l.b16 %v222
      %v307 = vunpack.c.l.b16 %v223
      %v308 = vunpack.c.l.b16 %v224
      %v309 = vunpack.c.l.b16 %v225
      %v310 = vunpack.c.l.b16 %v226
      %v311 = vunpack.c.l.b16 %v227
      %v312 = vunpack.c.l.b16 %v228
      %v313 = vunpack.c.l.b16 %v229
      %v314 = vunpack.c.l.b16 %v230
      %v315 = vunpack.c.l.b16 %v231
      %v316 = vunpack.c.l.b16 %v232
      %v317 = vunpack.c.l.b16 %v233
      %v318 = vunpack.c.l.b16 %v234
      %v319 = vunpack.c.l.b16 %v235
      %v320 = vunpack.c.l.b16 %v236
      %v321 = vunpack.c.l.b16 %v237
      %v322 = vunpack.c.l.b16 %v238
      %v323 = vunpack.c.l.b16 %v239
      %v324 = vunpack.c.l.b16 %v240
      %v325 = vunpack.c.l.b16 %v241
      %v326 = vunpack.c.l.b16 %v242
      %v327 = vunpack.c.l.b16 %v243
      %v328 = vunpack.c.l.b16 %v244
      %v329 = vunpack.c.l.b16 %v245
      %v330 = vunpack.c.l.b16 %v246
      %v331 = vunpack.c.l.b16 %v247
      %v332 = vunpack.c.l.b16 %v248
      %v333 = vunpack.c.l.b16 %v249
      %v334 = vunpack.c.l.b16 %v250
      %v335 = vunpack.c.l.b16 %v251
      %v336 = vunpack.c.l.b16 %v252
      %v337 = vunpack.c.l.b16 %v253
      %v338 = vunpack.c.l.b16 %v254
      %v339 = vunpack.c.l.b16 %v255
      %v340 = vpack.c.b16 %v301, %v300
      %v341 = vpack.c.b16 %v303, %v302
      %v342 = vpack.c.b16 %v305, %v304
      %v343 = vpack.c.b16 %v307, %v306
      %v344 = vpack.c.b16 %v309, %v308
      %v345 = vpack.c.b16 %v311, %v310
      %v346 = vpack.c.b16 %v313, %v312
      %v347 = vpack.c.b16 %v315, %v314
      %v348 = vpack.c.b16 %v317, %v316
      %v349 = vpack.c.b16 %v319, %v318
      %v350 = vpack.c.b16 %v321, %v320
      %v351 = vpack.c.b16 %v323, %v322
      %v352 = vpack.c.b16 %v325, %v324
      %v353 = vpack.c.b16 %v327, %v326
      %v354 = vpack.c.b16 %v329, %v328
      %v355 = vpack.c.b16 %v331, %v330
      %v356 = vpack.c.b16 %v333, %v332
      %v357 = vpack.c.b16 %v335, %v334
      %v358 = vpack.c.b16 %v337, %v336
      %v359 = vpack.c.b16 %v339, %v338
      %v364 = vunpack.c.l.b16 %v256
      %v365 = vunpack.c.l.b16 %v257
      %v366 = vunpack.c.l.b16 %v258
      %v367 = vunpack.c.l.b16 %v259
      %v368 = vpack.c.b16 %v365, %v364
      %v369 = vpack.c.b16 %v367, %v366
      %vm372 = vcmask 261120
      %v374 = vsel %vm372, %v340, 0
      %v377 = vsel %vm372, %v341, 0
      %v380 = vsel %vm372, %v342, 0
      %v383 = vsel %vm372, %v343, 0
      %v386 = vsel %vm372, %v344, 0
      %v389 = vsel %vm372, %v345, 0
      %v392 = vsel %vm372, %v346, 0
      %v395 = vsel %vm372, %v347, 0
      %v398 = vsel %vm372, %v348, 0
      %v401 = vsel %vm372, %v349, 0
      %v404 = vsel %vm372, %v350, 0
      %v407 = vsel %vm372, %v351, 0
      %v410 = vsel %vm372, %v352, 0
      %v413 = vsel %vm372, %v353, 0
      %v416 = vsel %vm372, %v354, 0
      %v419 = vsel %vm372, %v355, 0
      %v422 = vsel %vm372, %v356, 0
      %v425 = vsel %vm372, %v357, 0
      %v428 = vsel %vm372, %v358, 0
      %v431 = vsel %vm372, %v359, 0
      %433 = vmatpush.bf16.msra.mxu0 0
      %434 = vmatpush.bf16.msra.mxu0 0
      %435 = vmatpush.bf16.msra.mxu0 0
      %436 = vmatpush.bf16.msra.mxu0 0
      %437 = vmatpush.bf16.msra.mxu0 0
      %438 = vmatpush.bf16.msra.mxu0 0
      %439 = vmatpush.bf16.msra.mxu0 %v369
      %440 = vmatpush.bf16.msra.mxu0 %v368
      %441 = vmatmul.bf16.gmra.mxu0 %v374
      %v442 = vpop.f32.mrf.mxu0
      %v443 = vadd.f32 0.0, %v442
      %v444 = vpop.f32.mrf.mxu0
      %v445 = vadd.f32 0.0, %v444
      %446 = vmatmul.bf16.gmra.mxu0 %v377
      %v447 = vpop.f32.mrf.mxu0
      %v448 = vadd.f32 0.0, %v447
      %v449 = vpop.f32.mrf.mxu0
      %v450 = vadd.f32 0.0, %v449
      %451 = vmatmul.bf16.gmra.mxu0 %v380
      %v452 = vpop.f32.mrf.mxu0
      %v453 = vadd.f32 0.0, %v452
      %v454 = vpop.f32.mrf.mxu0
      %v455 = vadd.f32 0.0, %v454
      %456 = vmatmul.bf16.gmra.mxu0 %v383
      %v457 = vpop.f32.mrf.mxu0
      %v458 = vadd.f32 0.0, %v457
      %v459 = vpop.f32.mrf.mxu0
      %v460 = vadd.f32 0.0, %v459
      %461 = vmatmul.bf16.gmra.mxu0 %v386
      %v462 = vpop.f32.mrf.mxu0
      %v463 = vadd.f32 0.0, %v462
      %v464 = vpop.f32.mrf.mxu0
      %v465 = vadd.f32 0.0, %v464
      %466 = vmatmul.bf16.gmra.mxu0 %v389
      %v467 = vpop.f32.mrf.mxu0
      %v468 = vadd.f32 0.0, %v467
      %v469 = vpop.f32.mrf.mxu0
      %v470 = vadd.f32 0.0, %v469
      %471 = vmatmul.bf16.gmra.mxu0 %v392
      %v472 = vpop.f32.mrf.mxu0
      %v473 = vadd.f32 0.0, %v472
      %v474 = vpop.f32.mrf.mxu0
      %v475 = vadd.f32 0.0, %v474
      %476 = vmatmul.bf16.gmra.mxu0 %v395
      %v477 = vpop.f32.mrf.mxu0
      %v478 = vadd.f32 0.0, %v477
      %v479 = vpop.f32.mrf.mxu0
      %v480 = vadd.f32 0.0, %v479
      %481 = vmatmul.bf16.gmra.mxu0 %v398
      %v482 = vpop.f32.mrf.mxu0
      %v483 = vadd.f32 0.0, %v482
      %v484 = vpop.f32.mrf.mxu0
      %v485 = vadd.f32 0.0, %v484
      %486 = vmatmul.bf16.gmra.mxu0 %v401
      %v487 = vpop.f32.mrf.mxu0
      %v488 = vadd.f32 0.0, %v487
      %v489 = vpop.f32.mrf.mxu0
      %v490 = vadd.f32 0.0, %v489
      %491 = vmatmul.bf16.gmra.mxu0 %v404
      %v492 = vpop.f32.mrf.mxu0
      %v493 = vadd.f32 0.0, %v492
      %v494 = vpop.f32.mrf.mxu0
      %v495 = vadd.f32 0.0, %v494
      %496 = vmatmul.bf16.gmra.mxu0 %v407
      %v497 = vpop.f32.mrf.mxu0
      %v498 = vadd.f32 0.0, %v497
      %v499 = vpop.f32.mrf.mxu0
      %v500 = vadd.f32 0.0, %v499
      %501 = vmatmul.bf16.gmra.mxu0 %v410
      %v502 = vpop.f32.mrf.mxu0
      %v503 = vadd.f32 0.0, %v502
      %v504 = vpop.f32.mrf.mxu0
      %v505 = vadd.f32 0.0, %v504
      %506 = vmatmul.bf16.gmra.mxu0 %v413
      %v507 = vpop.f32.mrf.mxu0
      %v508 = vadd.f32 0.0, %v507
      %v509 = vpop.f32.mrf.mxu0
      %v510 = vadd.f32 0.0, %v509
      %511 = vmatmul.bf16.gmra.mxu0 %v416
      %v512 = vpop.f32.mrf.mxu0
      %v513 = vadd.f32 0.0, %v512
      %v514 = vpop.f32.mrf.mxu0
      %v515 = vadd.f32 0.0, %v514
      %516 = vmatmul.bf16.gmra.mxu0 %v419
      %v517 = vpop.f32.mrf.mxu0
      %v518 = vadd.f32 0.0, %v517
      %v519 = vpop.f32.mrf.mxu0
      %v520 = vadd.f32 0.0, %v519
      %521 = vmatmul.bf16.gmra.mxu0 %v422
      %v522 = vpop.f32.mrf.mxu0
      %v523 = vadd.f32 0.0, %v522
      %v524 = vpop.f32.mrf.mxu0
      %v525 = vadd.f32 0.0, %v524
      %526 = vmatmul.bf16.gmra.mxu0 %v425
      %v527 = vpop.f32.mrf.mxu0
      %v528 = vadd.f32 0.0, %v527
      %v529 = vpop.f32.mrf.mxu0
      %v530 = vadd.f32 0.0, %v529
      %531 = vmatmul.bf16.gmra.mxu0 %v428
      %v532 = vpop.f32.mrf.mxu0
      %v533 = vadd.f32 0.0, %v532
      %v534 = vpop.f32.mrf.mxu0
      %v535 = vadd.f32 0.0, %v534
      %536 = vmatmul.bf16.gmra.mxu0 %v431
      %v537 = vpop.f32.mrf.mxu0
      %v538 = vadd.f32 0.0, %v537
      %v539 = vpop.f32.mrf.mxu0
      %v540 = vadd.f32 0.0, %v539
      %541 = vdwg.mxu0
      %v542 = vld [vmem:[%s2] sm:$0xff]
      %v543 = vld [vmem:[%s2 + $0x8] sm:$0xff]
      %v544 = vld [vmem:[%s2 + $0x10] sm:$0xff]
      %v545 = vld [vmem:[%s2 + $0x18] sm:$0xff]
      %v546 = vld [vmem:[%s2 + $0x20] sm:$0xff]
      %v547 = vld [vmem:[%s2 + $0x28] sm:$0xff]
      %v548 = vld [vmem:[%s2 + $0x30] sm:$0xff]
      %v549 = vld [vmem:[%s2 + $0x38] sm:$0xff]
      %vm550 = vcmask 523264
      %v552 = vsel %vm550, %v443, 0
      %v555 = vsel %vm550, %v445, 0
      %v558 = vsel %vm550, %v448, 0
      %v561 = vsel %vm550, %v450, 0
      %v564 = vsel %vm550, %v453, 0
      %v567 = vsel %vm550, %v455, 0
      %v570 = vsel %vm550, %v458, 0
      %v573 = vsel %vm550, %v460, 0
      %v576 = vsel %vm550, %v463, 0
      %v579 = vsel %vm550, %v465, 0
      %v582 = vsel %vm550, %v468, 0
      %v585 = vsel %vm550, %v470, 0
      %v588 = vsel %vm550, %v473, 0
      %v591 = vsel %vm550, %v475, 0
      %v594 = vsel %vm550, %v478, 0
      %v597 = vsel %vm550, %v480, 0
      %v600 = vsel %vm550, %v483, 0
      %v603 = vsel %vm550, %v485, 0
      %v606 = vsel %vm550, %v488, 0
      %v609 = vsel %vm550, %v490, 0
      %v612 = vsel %vm550, %v493, 0
      %v615 = vsel %vm550, %v495, 0
      %v618 = vsel %vm550, %v498, 0
      %v621 = vsel %vm550, %v500, 0
      %v624 = vsel %vm550, %v503, 0
      %v627 = vsel %vm550, %v505, 0
      %v630 = vsel %vm550, %v508, 0
      %v633 = vsel %vm550, %v510, 0
      %v636 = vsel %vm550, %v513, 0
      %v639 = vsel %vm550, %v515, 0
      %v642 = vsel %vm550, %v518, 0
      %v645 = vsel %vm550, %v520, 0
      %v648 = vsel %vm550, %v523, 0
      %v651 = vsel %vm550, %v525, 0
      %v654 = vsel %vm550, %v528, 0
      %v657 = vsel %vm550, %v530, 0
      %v660 = vsel %vm550, %v533, 0
      %v663 = vsel %vm550, %v535, 0
      %v666 = vsel %vm550, %v538, 0
      %v669 = vsel %vm550, %v540, 0
      %671 = vmatpush.msra.mxu0 0.0
      %672 = vmatpush.msra.mxu0 0.0
      %673 = vmatpush.msra.mxu0 0.0
      %674 = vmatpush.msra.mxu0 0.0
      %675 = vmatpush.msra.mxu0 0.0
      %676 = vmatpush.msra.mxu0 0.0
      %677 = vmatpush.msra.mxu0 0.0
      %678 = vmatpush.msra.mxu0 0.0
      %679 = vmatpush.msra.mxu0 %v549
      %680 = vmatpush.msra.mxu0 %v548
      %681 = vmatpush.msra.mxu0 %v547
      %682 = vmatpush.msra.mxu0 %v546
      %683 = vmatpush.msra.mxu0 %v545
      %684 = vmatpush.msra.mxu0 %v544
      %685 = vmatpush.msra.mxu0 %v543
      %686 = vmatpush.msra.mxu0 %v542
      %687 = vmatmul.f32.gmra.mxu0 %v552
      %v688 = vpop.f32.mrf.mxu0
      %v689 = vadd.f32 0.0, %v688
      %690 = vmatmul.f32.gmra.mxu0 %v555
      %v691 = vpop.f32.mrf.mxu0
      %v692 = vadd.f32 0.0, %v691
      %693 = vmatmul.f32.gmra.mxu0 %v558
      %v694 = vpop.f32.mrf.mxu0
      %v695 = vadd.f32 0.0, %v694
      %696 = vmatmul.f32.gmra.mxu0 %v561
      %v697 = vpop.f32.mrf.mxu0
      %v698 = vadd.f32 0.0, %v697
      %699 = vmatmul.f32.gmra.mxu0 %v564
      %v700 = vpop.f32.mrf.mxu0
      %v701 = vadd.f32 0.0, %v700
      %702 = vmatmul.f32.gmra.mxu0 %v567
      %v703 = vpop.f32.mrf.mxu0
      %v704 = vadd.f32 0.0, %v703
      %705 = vmatmul.f32.gmra.mxu0 %v570
      %v706 = vpop.f32.mrf.mxu0
      %v707 = vadd.f32 0.0, %v706
      %708 = vmatmul.f32.gmra.mxu0 %v573
      %v709 = vpop.f32.mrf.mxu0
      %v710 = vadd.f32 0.0, %v709
      %711 = vmatmul.f32.gmra.mxu0 %v576
      %v712 = vpop.f32.mrf.mxu0
      %v713 = vadd.f32 0.0, %v712
      %714 = vmatmul.f32.gmra.mxu0 %v579
      %v715 = vpop.f32.mrf.mxu0
      %v716 = vadd.f32 0.0, %v715
      %717 = vmatmul.f32.gmra.mxu0 %v582
      %v718 = vpop.f32.mrf.mxu0
      %v719 = vadd.f32 0.0, %v718
      %720 = vmatmul.f32.gmra.mxu0 %v585
      %v721 = vpop.f32.mrf.mxu0
      %v722 = vadd.f32 0.0, %v721
      %723 = vmatmul.f32.gmra.mxu0 %v588
      %v724 = vpop.f32.mrf.mxu0
      %v725 = vadd.f32 0.0, %v724
      %726 = vmatmul.f32.gmra.mxu0 %v591
      %v727 = vpop.f32.mrf.mxu0
      %v728 = vadd.f32 0.0, %v727
      %729 = vmatmul.f32.gmra.mxu0 %v594
      %v730 = vpop.f32.mrf.mxu0
      %v731 = vadd.f32 0.0, %v730
      %732 = vmatmul.f32.gmra.mxu0 %v597
      %v733 = vpop.f32.mrf.mxu0
      %v734 = vadd.f32 0.0, %v733
      %735 = vmatmul.f32.gmra.mxu0 %v600
      %v736 = vpop.f32.mrf.mxu0
      %v737 = vadd.f32 0.0, %v736
      %738 = vmatmul.f32.gmra.mxu0 %v603
      %v739 = vpop.f32.mrf.mxu0
      %v740 = vadd.f32 0.0, %v739
      %741 = vmatmul.f32.gmra.mxu0 %v606
      %v742 = vpop.f32.mrf.mxu0
      %v743 = vadd.f32 0.0, %v742
      %744 = vmatmul.f32.gmra.mxu0 %v609
      %v745 = vpop.f32.mrf.mxu0
      %v746 = vadd.f32 0.0, %v745
      %747 = vmatmul.f32.gmra.mxu0 %v612
      %v748 = vpop.f32.mrf.mxu0
      %v749 = vadd.f32 0.0, %v748
      %750 = vmatmul.f32.gmra.mxu0 %v615
      %v751 = vpop.f32.mrf.mxu0
      %v752 = vadd.f32 0.0, %v751
      %753 = vmatmul.f32.gmra.mxu0 %v618
      %v754 = vpop.f32.mrf.mxu0
      %v755 = vadd.f32 0.0, %v754
      %756 = vmatmul.f32.gmra.mxu0 %v621
      %v757 = vpop.f32.mrf.mxu0
      %v758 = vadd.f32 0.0, %v757
      %759 = vmatmul.f32.gmra.mxu0 %v624
      %v760 = vpop.f32.mrf.mxu0
      %v761 = vadd.f32 0.0, %v760
      %762 = vmatmul.f32.gmra.mxu0 %v627
      %v763 = vpop.f32.mrf.mxu0
      %v764 = vadd.f32 0.0, %v763
      %765 = vmatmul.f32.gmra.mxu0 %v630
      %v766 = vpop.f32.mrf.mxu0
      %v767 = vadd.f32 0.0, %v766
      %768 = vmatmul.f32.gmra.mxu0 %v633
      %v769 = vpop.f32.mrf.mxu0
      %v770 = vadd.f32 0.0, %v769
      %771 = vmatmul.f32.gmra.mxu0 %v636
      %v772 = vpop.f32.mrf.mxu0
      %v773 = vadd.f32 0.0, %v772
      %774 = vmatmul.f32.gmra.mxu0 %v639
      %v775 = vpop.f32.mrf.mxu0
      %v776 = vadd.f32 0.0, %v775
      %777 = vmatmul.f32.gmra.mxu0 %v642
      %v778 = vpop.f32.mrf.mxu0
      %v779 = vadd.f32 0.0, %v778
      %780 = vmatmul.f32.gmra.mxu0 %v645
      %v781 = vpop.f32.mrf.mxu0
      %v782 = vadd.f32 0.0, %v781
      %783 = vmatmul.f32.gmra.mxu0 %v648
      %v784 = vpop.f32.mrf.mxu0
      %v785 = vadd.f32 0.0, %v784
      %786 = vmatmul.f32.gmra.mxu0 %v651
      %v787 = vpop.f32.mrf.mxu0
      %v788 = vadd.f32 0.0, %v787
      %789 = vmatmul.f32.gmra.mxu0 %v654
      %v790 = vpop.f32.mrf.mxu0
      %v791 = vadd.f32 0.0, %v790
      %792 = vmatmul.f32.gmra.mxu0 %v657
      %v793 = vpop.f32.mrf.mxu0
      %v794 = vadd.f32 0.0, %v793
      %795 = vmatmul.f32.gmra.mxu0 %v660
      %v796 = vpop.f32.mrf.mxu0
      %v797 = vadd.f32 0.0, %v796
      %798 = vmatmul.f32.gmra.mxu0 %v663
      %v799 = vpop.f32.mrf.mxu0
      %v800 = vadd.f32 0.0, %v799
      %801 = vmatmul.f32.gmra.mxu0 %v666
      %v802 = vpop.f32.mrf.mxu0
      %v803 = vadd.f32 0.0, %v802
      %804 = vmatmul.f32.gmra.mxu0 %v669
      %v805 = vpop.f32.mrf.mxu0
      %v806 = vadd.f32 0.0, %v805
      %807 = vdwg.mxu0
      %vm808 = vcmask 64512
      %809 = vst.msk [vmem:[%s213] sm:$0xff] %vm808, %v689
      %810 = vst.msk [vmem:[%s213 + $0x8] sm:$0xff] %vm808, %v692
      %811 = vst.msk [vmem:[%s213 + $0x10] sm:$0xff] %vm808, %v695
      %812 = vst.msk [vmem:[%s213 + $0x18] sm:$0xff] %vm808, %v698
      %813 = vst.msk [vmem:[%s213 + $0x20] sm:$0xff] %vm808, %v701
      %814 = vst.msk [vmem:[%s213 + $0x28] sm:$0xff] %vm808, %v704
      %815 = vst.msk [vmem:[%s213 + $0x30] sm:$0xff] %vm808, %v707
      %816 = vst.msk [vmem:[%s213 + $0x38] sm:$0xff] %vm808, %v710
      %817 = vst.msk [vmem:[%s213 + $0x40] sm:$0xff] %vm808, %v713
      %818 = vst.msk [vmem:[%s213 + $0x48] sm:$0xff] %vm808, %v716
      %819 = vst.msk [vmem:[%s213 + $0x50] sm:$0xff] %vm808, %v719
      %820 = vst.msk [vmem:[%s213 + $0x58] sm:$0xff] %vm808, %v722
      %821 = vst.msk [vmem:[%s213 + $0x60] sm:$0xff] %vm808, %v725
      %822 = vst.msk [vmem:[%s213 + $0x68] sm:$0xff] %vm808, %v728
      %823 = vst.msk [vmem:[%s213 + $0x70] sm:$0xff] %vm808, %v731
      %824 = vst.msk [vmem:[%s213 + $0x78] sm:$0xff] %vm808, %v734
      %825 = vst.msk [vmem:[%s213 + $0x80] sm:$0xff] %vm808, %v737
      %826 = vst.msk [vmem:[%s213 + $0x88] sm:$0xff] %vm808, %v740
      %827 = vst.msk [vmem:[%s213 + $0x90] sm:$0xff] %vm808, %v743
      %828 = vst.msk [vmem:[%s213 + $0x98] sm:$0xff] %vm808, %v746
      %829 = vst.msk [vmem:[%s213 + $0xa0] sm:$0xff] %vm808, %v749
      %830 = vst.msk [vmem:[%s213 + $0xa8] sm:$0xff] %vm808, %v752
      %831 = vst.msk [vmem:[%s213 + $0xb0] sm:$0xff] %vm808, %v755
      %832 = vst.msk [vmem:[%s213 + $0xb8] sm:$0xff] %vm808, %v758
      %833 = vst.msk [vmem:[%s213 + $0xc0] sm:$0xff] %vm808, %v761
      %834 = vst.msk [vmem:[%s213 + $0xc8] sm:$0xff] %vm808, %v764
      %835 = vst.msk [vmem:[%s213 + $0xd0] sm:$0xff] %vm808, %v767
      %836 = vst.msk [vmem:[%s213 + $0xd8] sm:$0xff] %vm808, %v770
      %837 = vst.msk [vmem:[%s213 + $0xe0] sm:$0xff] %vm808, %v773
      %838 = vst.msk [vmem:[%s213 + $0xe8] sm:$0xff] %vm808, %v776
      %839 = vst.msk [vmem:[%s213 + $0xf0] sm:$0xff] %vm808, %v779
      %840 = vst.msk [vmem:[%s213 + $0xf8] sm:$0xff] %vm808, %v782
      %841 = vst.msk [vmem:[%s213 + $0x100] sm:$0xff] %vm808, %v785
      %842 = vst.msk [vmem:[%s213 + $0x108] sm:$0xff] %vm808, %v788
      %843 = vst.msk [vmem:[%s213 + $0x110] sm:$0xff] %vm808, %v791
      %844 = vst.msk [vmem:[%s213 + $0x118] sm:$0xff] %vm808, %v794
      %845 = vst.msk [vmem:[%s213 + $0x120] sm:$0xff] %vm808, %v797
      %846 = vst.msk [vmem:[%s213 + $0x128] sm:$0xff] %vm808, %v800
      %847 = vst.msk [vmem:[%s213 + $0x130] sm:$0xff] %vm808, %v803
      %848 = vst.msk [vmem:[%s213 + $0x138] sm:$0xff] %vm808, %v806
      %v849 = vpack.c.bf16 %v443, %v443
      %v850 = vpack.c.bf16 %v445, %v445
      %v851 = vpack.c.bf16 %v448, %v448
      %v852 = vpack.c.bf16 %v450, %v450
      %v853 = vpack.c.bf16 %v453, %v453
      %v854 = vpack.c.bf16 %v455, %v455
      %v855 = vpack.c.bf16 %v458, %v458
      %v856 = vpack.c.bf16 %v460, %v460
      %v857 = vpack.c.bf16 %v463, %v463
      %v858 = vpack.c.bf16 %v465, %v465
      %v859 = vpack.c.bf16 %v468, %v468
      %v860 = vpack.c.bf16 %v470, %v470
      %v861 = vpack.c.bf16 %v473, %v473
      %v862 = vpack.c.bf16 %v475, %v475
      %v863 = vpack.c.bf16 %v478, %v478
      %v864 = vpack.c.bf16 %v480, %v480
      %v865 = vpack.c.bf16 %v483, %v483
      %v866 = vpack.c.bf16 %v485, %v485
      %v867 = vpack.c.bf16 %v488, %v488
      %v868 = vpack.c.bf16 %v490, %v490
      %v869 = vpack.c.bf16 %v493, %v493
      %v870 = vpack.c.bf16 %v495, %v495
      %v871 = vpack.c.bf16 %v498, %v498
      %v872 = vpack.c.bf16 %v500, %v500
      %v873 = vpack.c.bf16 %v503, %v503
      %v874 = vpack.c.bf16 %v505, %v505
      %v875 = vpack.c.bf16 %v508, %v508
      %v876 = vpack.c.bf16 %v510, %v510
      %v877 = vpack.c.bf16 %v513, %v513
      %v878 = vpack.c.bf16 %v515, %v515
      %v879 = vpack.c.bf16 %v518, %v518
      %v880 = vpack.c.bf16 %v520, %v520
      %v881 = vpack.c.bf16 %v523, %v523
      %v882 = vpack.c.bf16 %v525, %v525
      %v883 = vpack.c.bf16 %v528, %v528
      %v884 = vpack.c.bf16 %v530, %v530
      %v885 = vpack.c.bf16 %v533, %v533
      %v886 = vpack.c.bf16 %v535, %v535
      %v887 = vpack.c.bf16 %v538, %v538
      %v888 = vpack.c.bf16 %v540, %v540
      %vm889 = vcmask 519168
      %890 = vst.msk [vmem:[%s207] sm:$0xf] %vm889, %v849
      %891 = vst.msk [vmem:[%s207 + $0x4] sm:$0xf] %vm889, %v850
      %892 = vst.msk [vmem:[%s207 + $0x8] sm:$0xf] %vm889, %v851
      %893 = vst.msk [vmem:[%s207 + $0xc] sm:$0xf] %vm889, %v852
      %894 = vst.msk [vmem:[%s207 + $0x10] sm:$0xf] %vm889, %v853
      %895 = vst.msk [vmem:[%s207 + $0x14] sm:$0xf] %vm889, %v854
      %896 = vst.msk [vmem:[%s207 + $0x18] sm:$0xf] %vm889, %v855
      %897 = vst.msk [vmem:[%s207 + $0x1c] sm:$0xf] %vm889, %v856
      %898 = vst.msk [vmem:[%s207 + $0x20] sm:$0xf] %vm889, %v857
      %899 = vst.msk [vmem:[%s207 + $0x24] sm:$0xf] %vm889, %v858
      %900 = vst.msk [vmem:[%s207 + $0x28] sm:$0xf] %vm889, %v859
      %901 = vst.msk [vmem:[%s207 + $0x2c] sm:$0xf] %vm889, %v860
      %902 = vst.msk [vmem:[%s207 + $0x30] sm:$0xf] %vm889, %v861
      %903 = vst.msk [vmem:[%s207 + $0x34] sm:$0xf] %vm889, %v862
      %904 = vst.msk [vmem:[%s207 + $0x38] sm:$0xf] %vm889, %v863
      %905 = vst.msk [vmem:[%s207 + $0x3c] sm:$0xf] %vm889, %v864
      %906 = vst.msk [vmem:[%s207 + $0x40] sm:$0xf] %vm889, %v865
      %907 = vst.msk [vmem:[%s207 + $0x44] sm:$0xf] %vm889, %v866
      %908 = vst.msk [vmem:[%s207 + $0x48] sm:$0xf] %vm889, %v867
      %909 = vst.msk [vmem:[%s207 + $0x4c] sm:$0xf] %vm889, %v868
      %910 = vst.msk [vmem:[%s207 + $0x50] sm:$0xf] %vm889, %v869
      %911 = vst.msk [vmem:[%s207 + $0x54] sm:$0xf] %vm889, %v870
      %912 = vst.msk [vmem:[%s207 + $0x58] sm:$0xf] %vm889, %v871
      %913 = vst.msk [vmem:[%s207 + $0x5c] sm:$0xf] %vm889, %v872
      %914 = vst.msk [vmem:[%s207 + $0x60] sm:$0xf] %vm889, %v873
      %915 = vst.msk [vmem:[%s207 + $0x64] sm:$0xf] %vm889, %v874
      %916 = vst.msk [vmem:[%s207 + $0x68] sm:$0xf] %vm889, %v875
      %917 = vst.msk [vmem:[%s207 + $0x6c] sm:$0xf] %vm889, %v876
      %918 = vst.msk [vmem:[%s207 + $0x70] sm:$0xf] %vm889, %v877
      %919 = vst.msk [vmem:[%s207 + $0x74] sm:$0xf] %vm889, %v878
      %920 = vst.msk [vmem:[%s207 + $0x78] sm:$0xf] %vm889, %v879
      %921 = vst.msk [vmem:[%s207 + $0x7c] sm:$0xf] %vm889, %v880
      %922 = vst.msk [vmem:[%s207 + $0x80] sm:$0xf] %vm889, %v881
      %923 = vst.msk [vmem:[%s207 + $0x84] sm:$0xf] %vm889, %v882
      %924 = vst.msk [vmem:[%s207 + $0x88] sm:$0xf] %vm889, %v883
      %925 = vst.msk [vmem:[%s207 + $0x8c] sm:$0xf] %vm889, %v884
      %926 = vst.msk [vmem:[%s207 + $0x90] sm:$0xf] %vm889, %v885
      %927 = vst.msk [vmem:[%s207 + $0x94] sm:$0xf] %vm889, %v886
      %928 = vst.msk [vmem:[%s207 + $0x98] sm:$0xf] %vm889, %v887
      %929 = vst.msk [vmem:[%s207 + $0x9c] sm:$0xf] %vm889, %v888
      %s930 = smul.u32 40, %s16
      %p931 = scmp.lt.s32.totalorder %s930, 79
      %s932 = scalar_select %p931, %s930, 79
      %s933 = smul.addr %s932, 4
      %s934 = scalar_lea.vmem %s3, %s933
      %s935 = smul.u32 40, %s16
      %p936 = scmp.lt.s32.totalorder %s935, 79
      %s937 = scalar_select %p936, %s935, 79
      %s938 = smul.addr %s937, 8
      %s939 = scalar_lea.vmem %s4, %s938
      // Predicated region
      $region33: #{tpu_custom_call.1} parent=31 // pred_check
        %p940 = pneg %p102
      $region34: #{tpu_custom_call.1} parent=31 // pred_check_branch
        %942 = sbr.rel (%p940) target = $region36
      $region35: #{tpu_custom_call.1} parent=31 // pred_region
        %s943 = smul.u32 40, %s16
      $region36: #{tpu_custom_call.1} parent=31 // pred_fallthru
        _
      // Predicated region
      $region37: #{tpu_custom_call.1} parent=31 // pred_check
        %p944 = pneg %p128
      $region38: #{tpu_custom_call.1} parent=31 // pred_check_branch
        %946 = sbr.rel (%p944) target = $region40
      $region39: #{tpu_custom_call.1} parent=31 // pred_region
        %s947 = smul.u32 40, %s16
      $region40: #{tpu_custom_call.1} parent=31 // pred_fallthru
        _
    $region32: #{tpu_custom_call.1} parent=5 // pred_fallthru
      _
    %p948 = scmp.le.s32.totalorder 2, %s11
    // Predicated region
    $region41: #{tpu_custom_call.1} parent=5 // pred_check
      %p949 = pneg %p948
    $region42: #{tpu_custom_call.1} parent=5 // pred_check_branch
      %951 = sbr.rel (%p949) target = $region44
    $region43: #{tpu_custom_call.1} parent=5 // pred_region
      %s952 = ssub.s32 %s11, 2
      // Predicated region
      $region45: #{tpu_custom_call.1} parent=43 // pred_check
        %p953 = pneg %p108
      $region46: #{tpu_custom_call.1} parent=43 // pred_check_branch
        %955 = sbr.rel (%p953) target = $region48
      $region47: #{tpu_custom_call.1} parent=43 // pred_region
        %s956 = smul.u32 40, %s17
        %p957 = scmp.lt.s32.totalorder %s956, 79
        %s958 = scalar_select %p957, %s956, 79
        %s959 = smul.addr %s958, 4
        %s960 = scalar_lea.vmem %s3, %s959
      $region48: #{tpu_custom_call.1} parent=43 // pred_fallthru
        _
      // Predicated region
      $region49: #{tpu_custom_call.1} parent=43 // pred_check
        %p961 = pneg %p134
      $region50: #{tpu_custom_call.1} parent=43 // pred_check_branch
        %963 = sbr.rel (%p961) target = $region52
      $region51: #{tpu_custom_call.1} parent=43 // pred_region
        %s964 = smul.u32 40, %s17
        %p965 = scmp.lt.s32.totalorder %s964, 79
        %s966 = scalar_select %p965, %s964, 79
        %s967 = smul.addr %s966, 8
        %s968 = scalar_lea.vmem %s4, %s967
      $region52: #{tpu_custom_call.1} parent=43 // pred_fallthru
        _
    $region44: #{tpu_custom_call.1} parent=5 // pred_fallthru
      _
  $region6: #{tpu_custom_call.1} parent=0 // loop_footer
    %s15 = sadd.s32 1, %s11
  $region7: #{tpu_custom_call.1} parent=0 // loop_footer_branch
    %10 = sbr.rel target = $region3
  $region8: #{tpu_custom_call.1} parent=0 // loop_exit
    _

</llo_original>
